<compile_context>
chip_gen: v5e
topology: v5e:2x2
jax: 0.10.0
libtpu: 0.0.40
codegen_flags: <defaults>
</compile_context>

<pallas_src>
import functools

import jax
import jax.numpy as jnp
from jax.experimental import pallas as pl
from jax.experimental.pallas import tpu as pltpu


def _round_up(x, m):
    return (x + m - 1) // m * m


@functools.lru_cache(maxsize=1)
def _tile_config():
    """Generation-tuned tile sizes and VMEM budgets."""
    kind = ""
    try:
        kind = jax.devices()[0].device_kind.lower()
    except Exception:
        pass
    if "v7" in kind:
        # v7x: 64 MiB VMEM per TC (32 MiB scoped default); break-even AI ~620.
        return dict(tm=1536, tn=1536, tk=512,
                    vmem_limit=48 << 20, resident_budget=20 << 20)
    if "v6" in kind:
        # v6e: 128 MiB VMEM; break-even AI ~650 -> 2048-wide output tiles.
        return dict(tm=2048, tn=2048, tk=512,
                    vmem_limit=64 << 20, resident_budget=40 << 20)
    # v5e / v5p / unknown: conservative tiles that fit a 16 MiB scoped default.
    return dict(tm=512, tn=512, tk=512,
                vmem_limit=None, resident_budget=8 << 20)


# ----------------------------- Pallas kernels ------------------------------ #
def _matmul_bias_tiled_kernel(x_ref, w_ref, b_ref, o_ref, acc_ref):
    """One (tm, tn) output tile; K reduced along grid axis 2 (innermost)."""
    k = pl.program_id(2)

    @pl.when(k == 0)
    def _init():
        # Bias-initialise the f32 accumulator (b's index map is k-independent)
        # so the finalize branch is just a downcast + store.
        acc_ref[...] = jnp.broadcast_to(b_ref[...], acc_ref.shape)

    acc_ref[...] += jnp.dot(
        x_ref[...], w_ref[...], preferred_element_type=jnp.float32
    )

    @pl.when(k == pl.num_programs(2) - 1)
    def _store():
        o_ref[...] = acc_ref[...].astype(o_ref.dtype)


def _matmul_bias_resident_kernel(x_ref, w_ref, b_ref, o_ref):
    """Whole weight resident in VMEM; one (tm, Np) output slab per step."""
    acc = jnp.dot(x_ref[...], w_ref[...], preferred_element_type=jnp.float32)
    o_ref[...] = (acc + b_ref[...]).astype(o_ref.dtype)


# ------------------------------ Host wrapper ------------------------------- #
def linear_pallas(x2d, w, b, *, tm=None, tn=None, tk=None,
                  compute_dtype=jnp.bfloat16, force_path=None):
    """x2d: (M, K), w: (K, N), b: (N,)  ->  (M, N) in x2d.dtype."""
    M, K = x2d.shape
    K2, N = w.shape
    assert K == K2 and b.shape[-1] == N
    out_dtype = x2d.dtype
    out_item = jnp.dtype(out_dtype).itemsize
    in_item = jnp.dtype(compute_dtype).itemsize

    cfg = _tile_config()
    tm = cfg["tm"] if tm is None else tm
    tn = cfg["tn"] if tn is None else tn
    tk = cfg["tk"] if tk is None else tk

    # bf16 packs 16 sublanes per vreg -> tm multiple of 16; lanes are 128 wide.
    tm = min(tm, _round_up(M, 16))
    tk = min(tk, _round_up(K, 128))
    tn = min(tn, _round_up(N, 128))

    # Casts: activations per call; weights/bias are cast once in Linear.
    xc = x2d if x2d.dtype == compute_dtype else x2d.astype(compute_dtype)
    wc = w if w.dtype == compute_dtype else w.astype(compute_dtype)
    bc = (b if b.dtype == jnp.float32 else b.astype(jnp.float32)).reshape(1, N)

    # ---------- path selection: weight-resident vs. (M, N, K)-tiled ---------
    Kp_r, Np_r = _round_up(K, 128), _round_up(N, 128)

    def resident_fits(tm_r):
        foot = (2 * Kp_r * Np_r * in_item      # W (double-buffer safety)
                + 2 * tm_r * Kp_r * in_item    # x tiles, double-buffered
                + 2 * tm_r * Np_r * out_item   # out tiles, double-buffered
                + 2 * Np_r * 4)                # bias
        return foot <= cfg["resident_budget"]

    tm_r = tm
    if force_path == "tiled":
        use_resident = False
    elif force_path == "resident":
        use_resident = True
    else:
        while tm_r > 16 and not resident_fits(tm_r):
            tm_r = max(16, _round_up(tm_r // 2, 16))
        use_resident = resident_fits(tm_r)

    if use_resident:
        # Weight is DMA'd to VMEM once (constant block index) and stays
        # resident while the M axis streams.
        tm = tm_r
        Mp, Kp, Np = _round_up(M, tm), Kp_r, Np_r
        xp = xc if (Mp == M and Kp == K) else jnp.pad(
            xc, ((0, Mp - M), (0, Kp - K)))
        wp = wc if (Kp == K and Np == N) else jnp.pad(
            wc, ((0, Kp - K), (0, Np - N)))
        bp = bc if Np == N else jnp.pad(bc, ((0, 0), (0, Np - N)))

        cost = pl.CostEstimate(
            flops=2 * Mp * Np * Kp,
            transcendentals=0,
            bytes_accessed=(Mp * Kp * in_item + Kp * Np * in_item
                            + Np * 4 + Mp * Np * out_item),
        )

        out_p = pl.pallas_call(
            _matmul_bias_resident_kernel,
            out_shape=jax.ShapeDtypeStruct((Mp, Np), out_dtype),
            grid_spec=pltpu.PrefetchScalarGridSpec(
                num_scalar_prefetch=0,
                grid=(Mp // tm,),
                in_specs=[
                    pl.BlockSpec((tm, Kp), lambda i: (i, 0)),
                    pl.BlockSpec((Kp, Np), lambda i: (0, 0)),  # constant -> resident
                    pl.BlockSpec((1, Np), lambda i: (0, 0)),
                ],
                out_specs=pl.BlockSpec((tm, Np), lambda i: (i, 0)),
            ),
            compiler_params=pltpu.CompilerParams(
                dimension_semantics=("parallel",),
                vmem_limit_bytes=cfg["vmem_limit"],
            ),
            cost_estimate=cost,
        )(xp, wp, bp)
    else:
        Mp, Kp, Np = _round_up(M, tm), _round_up(K, tk), _round_up(N, tn)
        xp = xc if (Mp == M and Kp == K) else jnp.pad(
            xc, ((0, Mp - M), (0, Kp - K)))
        wp = wc if (Kp == K and Np == N) else jnp.pad(
            wc, ((0, Kp - K), (0, Np - N)))
        bp = bc if Np == N else jnp.pad(bc, ((0, 0), (0, Np - N)))

        grid = (Mp // tm, Np // tn, Kp // tk)

        # Bytes include the real tile re-reads for this grid:
        # x re-read once per N tile, w re-read once per M tile.
        cost = pl.CostEstimate(
            flops=2 * Mp * Np * Kp,
            transcendentals=0,
            bytes_accessed=(Mp * Kp * in_item * (Np // tn)
                            + Kp * Np * in_item * (Mp // tm)
                            + Np * 4 * (Mp // tm)
                            + Mp * Np * out_item),
        )

        out_p = pl.pallas_call(
            _matmul_bias_tiled_kernel,
            out_shape=jax.ShapeDtypeStruct((Mp, Np), out_dtype),
            grid_spec=pltpu.PrefetchScalarGridSpec(
                num_scalar_prefetch=0,
                grid=grid,
                in_specs=[
                    pl.BlockSpec((tm, tk), lambda i, j, k: (i, k)),
                    pl.BlockSpec((tk, tn), lambda i, j, k: (k, j)),
                    pl.BlockSpec((1, tn), lambda i, j, k: (0, j)),
                ],
                out_specs=pl.BlockSpec((tm, tn), lambda i, j, k: (i, j)),
                scratch_shapes=[pltpu.VMEM((tm, tn), jnp.float32)],
            ),
            compiler_params=pltpu.CompilerParams(
                # M/N independent (megacore-shardable); K carries the acc.
                dimension_semantics=("parallel", "parallel", "arbitrary"),
                vmem_limit_bytes=cfg["vmem_limit"],
            ),
            cost_estimate=cost,
        )(xp, wp, bp)

    if Mp == M and Np == N:
        return out_p
    return out_p[:M, :N]


# ------------------------------ Model pieces ------------------------------- #
class Linear:
    """nn.Linear-equivalent whose forward runs in the Pallas kernel."""

    # Below this many MACs the fixed pallas_call/DMA setup cost dominates and
    # plain XLA fusion wins; the demo forces the Pallas path regardless.
    _MIN_PALLAS_MACS = 1 << 22

    def __init__(self, weight, bias, *, force_pallas=False,
                 compute_dtype=jnp.bfloat16):
        # Cast static parameters ONCE at construction (no per-call HBM pass).
        self.weight = jnp.asarray(weight, dtype=compute_dtype)   # (K, N)
        self.bias = jnp.asarray(bias, dtype=jnp.float32)         # (N,)
        self.compute_dtype = compute_dtype
        self.force_pallas = force_pallas

    def __call__(self, x):
        lead = x.shape[:-1]
        k = x.shape[-1]
        n = self.weight.shape[-1]
        x2d = x.reshape(-1, k)
        m = x2d.shape[0]
        if self.force_pallas or (m * k * n >= self._MIN_PALLAS_MACS):
            y2d = linear_pallas(x2d, self.weight, self.bias,
                                compute_dtype=self.compute_dtype)
        else:
            y2d = (x2d.astype(self.compute_dtype) @ self.weight
                   ).astype(jnp.float32) + self.bias
            y2d = y2d.astype(x.dtype)
        return y2d.reshape(*lead, n)


class Applier:
    """Faithful port of the PyTorch Applier: forward(x) = applier(model, x)."""

    def __init__(self, model, applier):
        self.model = model
        self.applier = applier

    def __call__(self, x):
        return self.applier(self.model, x)


# --------------------------------- Demo ------------------------------------ #
if __name__ == "__main__":
    key = jax.random.PRNGKey(0)
    batch, seq, hidden = 2, 8, 32

    k_x, k_w, k_b, k_x2, k_w2, k_b2 = jax.random.split(key, 6)
    x = jax.random.normal(k_x, (batch, seq, hidden), dtype=jnp.float32)
    w = jax.random.normal(k_w, (hidden, hidden), dtype=jnp.float32) * 0.05
    b = jax.random.normal(k_b, (hidden,), dtype=jnp.float32) * 0.05

    model = Linear(w, b, force_pallas=True)      # exercise the Pallas path
    applier_fn = lambda m, inp: m(inp)           # the `applier` callable
    module = Applier(model, applier_fn)          # the module under test

    out = jax.block_until_ready(module(x))

    # Reference of the same instantiation in plain f32 JAX. Tolerance is
    # loosened because inputs are cast to bf16 (accumulation stays f32).
    ref = (x.reshape(-1, hidden) @ w + b).reshape(batch, seq, hidden)
    assert out.shape == (batch, seq, hidden)
    assert jnp.allclose(out, ref, atol=1e-2, rtol=1e-2)

    # Also exercise the (M, N, K)-tiled accumulator path at small shapes.
    m2, k2, n2 = 32, 256, 256
    x2 = jax.random.normal(k_x2, (m2, k2), dtype=jnp.float32)
    w2 = jax.random.normal(k_w2, (k2, n2), dtype=jnp.float32) * 0.05
    b2 = jax.random.normal(k_b2, (n2,), dtype=jnp.float32) * 0.05
    out2 = jax.block_until_ready(
        linear_pallas(x2, w2.astype(jnp.bfloat16), b2,
                      tn=128, tk=128, force_path="tiled"))
    ref2 = x2 @ w2 + b2
    assert out2.shape == (m2, n2)
    assert jnp.allclose(out2, ref2, atol=3e-2, rtol=3e-2)

    print("KERNEL_OK")
</pallas_src>

<mosaic_0001>
module attributes {stable_mosaic.version = 11 : i64} {
  func.func @_matmul_bias_resident_kernel(%arg0: i32, %arg1: memref<16x128xbf16, #tpu.memory_space<vmem>>, %arg2: memref<128x128xbf16, #tpu.memory_space<vmem>>, %arg3: memref<1x128xf32, #tpu.memory_space<vmem>>, %arg4: memref<16x128xf32, #tpu.memory_space<vmem>>) attributes {dimension_semantics = [#tpu.dimension_semantics<parallel>], iteration_bounds = array<i64: 1>, scalar_prefetch = 0 : i64, scratch_operands = 0 : i64, tpu.core_type = #tpu.core_type<tc>, window_params = [{transform_indices = @transform_0, window_bounds = array<i64: 16, 128>}, {pipeline_mode = #tpu.pipeline_mode<synchronous>, transform_indices = @transform_1, window_bounds = array<i64: 128, 128>}, {pipeline_mode = #tpu.pipeline_mode<synchronous>, transform_indices = @transform_2, window_bounds = array<i64: 1, 128>}, {transform_indices = @transform_3, window_bounds = array<i64: 16, 128>}]} {
    %c0 = arith.constant 0 : index
    %c0_0 = arith.constant 0 : index
    %0 = vector.load %arg1[%c0, %c0_0] : memref<16x128xbf16, #tpu.memory_space<vmem>>, vector<16x128xbf16>
    %c0_1 = arith.constant 0 : index
    %c0_2 = arith.constant 0 : index
    %1 = vector.load %arg2[%c0_1, %c0_2] : memref<128x128xbf16, #tpu.memory_space<vmem>>, vector<128x128xbf16>
    %cst = arith.constant dense<0.000000e+00> : vector<16x128xf32>
    %2 = tpu.matmul %0, %1, %cst {dimension_numbers = #tpu.dot_dimension_numbers<[1], [0], [0], [1], [0, 0, 1, 1], [], []>} : vector<16x128xbf16>, vector<128x128xbf16>, vector<16x128xf32> -> vector<16x128xf32>
    %c0_3 = arith.constant 0 : index
    %c0_4 = arith.constant 0 : index
    %3 = vector.load %arg3[%c0_3, %c0_4] : memref<1x128xf32, #tpu.memory_space<vmem>>, vector<1x128xf32>
    %4 = vector.broadcast %3 : vector<1x128xf32> to vector<16x128xf32>
    %5 = arith.addf %2, %4 : vector<16x128xf32>
    %c0_5 = arith.constant 0 : index
    %c0_6 = arith.constant 0 : index
    %6 = vector.load %arg4[%c0_5, %c0_6] : memref<16x128xf32, #tpu.memory_space<vmem>>, vector<16x128xf32>
    tpu.vector_store %arg4[%c0_5, %c0_6], %5 {strides = array<i32>} : memref<16x128xf32, #tpu.memory_space<vmem>>, vector<16x128xf32>,
    return
  }
  func.func @transform_0(%arg0: i32) -> (i32, i32) {
    %c0_i32 = arith.constant 0 : i32
    %c0_i32_0 = arith.constant 0 : i32
    return %arg0, %c0_i32 : i32, i32
  }
  func.func @transform_1(%arg0: i32) -> (i32, i32) {
    %c0_i32 = arith.constant 0 : i32
    %c0_i32_0 = arith.constant 0 : i32
    %c0_i32_1 = arith.constant 0 : i32
    return %c0_i32, %c0_i32_0 : i32, i32
  }
  func.func @transform_2(%arg0: i32) -> (i32, i32) {
    %c0_i32 = arith.constant 0 : i32
    %c0_i32_0 = arith.constant 0 : i32
    %c0_i32_1 = arith.constant 0 : i32
    return %c0_i32, %c0_i32_0 : i32, i32
  }
  func.func @transform_3(%arg0: i32) -> (i32, i32) {
    %c0_i32 = arith.constant 0 : i32
    %c0_i32_0 = arith.constant 0 : i32
    return %arg0, %c0_i32 : i32, i32
  }
}

</mosaic_0001>

<llo_original>
// kernel: tpu_custom_call.1
$region0: #{tpu_custom_call.1}
  #allocation0 [shape = 'u32[]', space=smem, size = 0x4, offset = 0x4, fixed_abs, tag = 'smem constant byte address 0x4 - core index']
  #allocation1 [shape = 'u32[72,128]{1,0:T(1,128)}', space=vmem, size = 0x9000, scoped, tag = 'internal scratch']
  %s0 = inlined_call_operand.hbm [shape: bf16[16,128], index: 0, kind: input, shape index: {}]
  %s1 = inlined_call_operand.hbm [shape: bf16[128,128], index: 1, kind: input, shape index: {}]
  %s2 = inlined_call_operand.vmem [shape: f32[1,128], index: 2, kind: input, shape index: {}]
  %s3 = inlined_call_operand.hbm [shape: f32[16,128], index: 3, kind: output, shape index: {}]
  %s4 = sld [smem:[#allocation0]]
  $region30: #{tpu_custom_call.1} parent=0
    _
  %s6 = ssub.s32 1, %s4
  %s7 = scalar_select 0, %s6, %s4
  $region1: #{tpu_custom_call.1} parent=0
    #allocation2 [shape = 'u8[4096]{0}', space=vmem, size = 0x1000, scoped, tag = 'input window, operand 0, single buffered']
    #allocation3 [shape = 's32[1]{0}', space=sflag, size = 0x4, scoped, tag = 'scoped memory for tpu_custom_call.1']
    #allocation4 [shape = 's32[1]{0}', space=sflag, size = 0x4, scoped, tag = 'scoped memory for tpu_custom_call.1']
    #allocation5 [shape = 'u8[32768]{0}', space=vmem, size = 0x8000, scoped, tag = 'input window, operand 1, single buffered']
    #allocation6 [shape = 's32[1]{0}', space=sflag, size = 0x4, scoped, tag = 'scoped memory for tpu_custom_call.1']
    #allocation7 [shape = 'u8[8192]{0}', space=vmem, size = 0x2000, scoped, tag = 'output window, operand 0, single buffered']
    %8 = vsyncpa [#allocation3], 0
    %9 = vsyncpa [#allocation6], 0
    %10 = vsyncpa [#allocation4], 0
    // Predicated region
    $region2: #{tpu_custom_call.1} parent=1 // pred_check
      _
    $region3: #{tpu_custom_call.1} parent=1 // pred_check_branch
      %12 = sbr.rel (0) target = $region5
    $region4: #{tpu_custom_call.1} parent=1 // pred_region
      %14 = vsyncadd [#allocation3], 0
      %s15 = sshll.u32 %s0, 4
      %s16 = int_to_ptr.hbm [resolvable:$true] %s15
      %s17 = sshll.u32 [#allocation2], 4
      %s18 = int_to_ptr.vmem [resolvable:$true] %s17
      %23 = dma.hbm_to_vmem [thread:$0]  %s16, 128, %s18, [#allocation3], 64, 64, 4
    $region5: #{tpu_custom_call.1} parent=1 // pred_fallthru
      _
    // Predicated region
    $region6: #{tpu_custom_call.1} parent=1 // pred_check
      _
    $region7: #{tpu_custom_call.1} parent=1 // pred_check_branch
      %25 = sbr.rel (0) target = $region9
    $region8: #{tpu_custom_call.1} parent=1 // pred_region
      %27 = vsyncadd [#allocation6], 0
      %s28 = sshll.u32 %s1, 4
      %s29 = int_to_ptr.hbm [resolvable:$true] %s28
      %s30 = sshll.u32 [#allocation5], 4
      %s31 = int_to_ptr.vmem [resolvable:$true] %s30
      %36 = dma.hbm_to_vmem [thread:$0]  %s29, 1024, %s31, [#allocation6], 64, 64, 4
    $region9: #{tpu_custom_call.1} parent=1 // pred_fallthru
      _
    // Predicated region
    $region10: #{tpu_custom_call.1} parent=1 // pred_check
      _
    $region11: #{tpu_custom_call.1} parent=1 // pred_check_branch
      %38 = sbr.rel (0) target = $region13
    $region12: #{tpu_custom_call.1} parent=1 // pred_region
      _
    $region13: #{tpu_custom_call.1} parent=1 // pred_fallthru
      _
    // Predicated region
    $region14: #{tpu_custom_call.1} parent=1 // pred_check
      _
    $region15: #{tpu_custom_call.1} parent=1 // pred_check_branch
      %40 = sbr.rel (0) target = $region17
    $region16: #{tpu_custom_call.1} parent=1 // pred_region
      %42 = dma.done [#allocation3], 128
    $region17: #{tpu_custom_call.1} parent=1 // pred_fallthru
      _
    // Predicated region
    $region18: #{tpu_custom_call.1} parent=1 // pred_check
      _
    $region19: #{tpu_custom_call.1} parent=1 // pred_check_branch
      %44 = sbr.rel (0) target = $region21
    $region20: #{tpu_custom_call.1} parent=1 // pred_region
      %46 = dma.done [#allocation6], 1024
    $region21: #{tpu_custom_call.1} parent=1 // pred_fallthru
      _
    %v47 = vld [vmem:[#allocation2] sm:$0xf]
    %v48 = vld [vmem:[#allocation2 + $0x4] sm:$0xf]
    %v49 = vld [vmem:[#allocation5] sm:$0xf]
    %v50 = vld [vmem:[#allocation5 + $0x4] sm:$0xf]
    %v51 = vld [vmem:[#allocation5 + $0x8] sm:$0xf]
    %v52 = vld [vmem:[#allocation5 + $0xc] sm:$0xf]
    %v53 = vld [vmem:[#allocation5 + $0x10] sm:$0xf]
    %v54 = vld [vmem:[#allocation5 + $0x14] sm:$0xf]
    %v55 = vld [vmem:[#allocation5 + $0x18] sm:$0xf]
    %v56 = vld [vmem:[#allocation5 + $0x1c] sm:$0xf]
    %v57 = vld [vmem:[#allocation5 + $0x20] sm:$0xf]
    %v58 = vld [vmem:[#allocation5 + $0x24] sm:$0xf]
    %v59 = vld [vmem:[#allocation5 + $0x28] sm:$0xf]
    %v60 = vld [vmem:[#allocation5 + $0x2c] sm:$0xf]
    %v61 = vld [vmem:[#allocation5 + $0x30] sm:$0xf]
    %v62 = vld [vmem:[#allocation5 + $0x34] sm:$0xf]
    %v63 = vld [vmem:[#allocation5 + $0x38] sm:$0xf]
    %v64 = vld [vmem:[#allocation5 + $0x3c] sm:$0xf]
    %v65 = vld [vmem:[%s2] sm:$0x1]
    %v67 = vperm.slane %v65, 0
    %v71 = vunpack.c.l.b16 %v47
    %v72 = vunpack.c.l.b16 %v48
    %v73 = vpack.c.b16 %v72, %v71
    %v91 = vunpack.c.l.b16 %v49
    %v92 = vunpack.c.l.b16 %v50
    %v93 = vunpack.c.l.b16 %v51
    %v94 = vunpack.c.l.b16 %v52
    %v95 = vunpack.c.l.b16 %v53
    %v96 = vunpack.c.l.b16 %v54
    %v97 = vunpack.c.l.b16 %v55
    %v98 = vunpack.c.l.b16 %v56
    %v99 = vunpack.c.l.b16 %v57
    %v100 = vunpack.c.l.b16 %v58
    %v101 = vunpack.c.l.b16 %v59
    %v102 = vunpack.c.l.b16 %v60
    %v103 = vunpack.c.l.b16 %v61
    %v104 = vunpack.c.l.b16 %v62
    %v105 = vunpack.c.l.b16 %v63
    %v106 = vunpack.c.l.b16 %v64
    %v107 = vpack.c.b16 %v92, %v91
    %v108 = vpack.c.b16 %v94, %v93
    %v109 = vpack.c.b16 %v96, %v95
    %v110 = vpack.c.b16 %v98, %v97
    %v111 = vpack.c.b16 %v100, %v99
    %v112 = vpack.c.b16 %v102, %v101
    %v113 = vpack.c.b16 %v104, %v103
    %v114 = vpack.c.b16 %v106, %v105
    %123 = vmatpush.bf16.msra.mxu0 %v114
    %124 = vmatpush.bf16.msra.mxu0 %v113
    %125 = vmatpush.bf16.msra.mxu0 %v112
    %126 = vmatpush.bf16.msra.mxu0 %v111
    %127 = vmatpush.bf16.msra.mxu0 %v110
    %128 = vmatpush.bf16.msra.mxu0 %v109
    %129 = vmatpush.bf16.msra.mxu0 %v108
    %130 = vmatpush.bf16.msra.mxu0 %v107
    %131 = vmatmul.bf16.gmra.mxu0 %v73
    %v132 = vpop.f32.mrf.mxu0
    %v133 = vadd.f32 %v67, %v132
    %v134 = vpop.f32.mrf.mxu0
    %v135 = vadd.f32 %v67, %v134
    %136 = vdwg.mxu0
    %137 = vst [vmem:[#allocation7] sm:$0xff] %v133
    %138 = vst [vmem:[#allocation7 + $0x8] sm:$0xff] %v135
    // Predicated region
    $region22: #{tpu_custom_call.1} parent=1 // pred_check
      _
    $region23: #{tpu_custom_call.1} parent=1 // pred_check_branch
      %140 = sbr.rel (0) target = $region25
    $region24: #{tpu_custom_call.1} parent=1 // pred_region
      %142 = vsyncadd [#allocation4], 0
      %s143 = sshll.u32 [#allocation7], 4
      %s144 = int_to_ptr.vmem [resolvable:$true] %s143
      %s145 = sshll.u32 %s3, 4
      %s146 = int_to_ptr.hbm [resolvable:$true] %s145
      %151 = dma.vmem_to_hbm [thread:$0]  %s144, 256, %s146, [#allocation4], 128, 128, 8
    $region25: #{tpu_custom_call.1} parent=1 // pred_fallthru
      _
    // Predicated region
    $region26: #{tpu_custom_call.1} parent=1 // pred_check
      _
    $region27: #{tpu_custom_call.1} parent=1 // pred_check_branch
      %153 = sbr.rel (0) target = $region29
    $region28: #{tpu_custom_call.1} parent=1 // pred_region
      %155 = dma.done [#allocation4], 256
    $region29: #{tpu_custom_call.1} parent=1 // pred_fallthru
      _
    %156 = vsyncpa [#allocation3], 1
    %157 = vsyncpa [#allocation6], 1
    %158 = vsyncpa [#allocation4], 1

</llo_original>
